<compile_context>
chip_gen: v5e
topology: v5e:2x2
jax: 0.10.0
libtpu: 0.0.40
codegen_flags: <defaults>
</compile_context>

<pallas_src>
import functools

import jax
import jax.numpy as jnp
from jax import lax
from jax.experimental import pallas as pl
from jax.experimental.pallas import tpu as pltpu

NORM_EPS = 1e-8        # eps used by fairnr's normalize()
LANE = 128
MAX_ROW_TILE = 4096    # rows of 128 lanes per grid step (~20 MiB double-buffered in+out, f32)


def _round_up(x, m):
    return (x + m - 1) // m * m


def _store_normalized_dirs(coef_ref, base, u, v, dir_ref):
    """Shared tail: d_k = A_k*u + B_k*v + C_k, normalize, store 3 dense planes."""
    d0 = coef_ref[base + 0] * u + coef_ref[base + 1] * v + coef_ref[base + 2]
    d1 = coef_ref[base + 3] * u + coef_ref[base + 4] * v + coef_ref[base + 5]
    d2 = coef_ref[base + 6] * u + coef_ref[base + 7] * v + coef_ref[base + 8]
    # fairnr normalize(): divide by (||d|| + eps); one exact reciprocal, three multiplies.
    norm = jnp.sqrt(d0 * d0 + d1 * d1 + d2 * d2) + NORM_EPS
    inv = pl.reciprocal(norm)
    dir_ref[0] = (d0 * inv).astype(dir_ref.dtype)
    dir_ref[1] = (d1 * inv).astype(dir_ref.dtype)
    dir_ref[2] = (d2 * inv).astype(dir_ref.dtype)


def _ray_dir_kernel_uv(coef_ref, uv_ref, dir_ref):
    # coef_ref: SMEM (S*V*9,) f32 -> per view [A0,B0,C0, A1,B1,C1, A2,B2,C2]
    # uv_ref  : VMEM (2, Rt, 128)  u/v planes for the current (view, row-chunk)
    # dir_ref : VMEM (3, Rt, 128)  normalized ray-direction planes
    base = pl.program_id(0) * 9
    _store_normalized_dirs(coef_ref, base, uv_ref[0], uv_ref[1], dir_ref)


def _ray_dir_kernel_grid(coef_ref, dir_ref, *, width, row_tile):
    # Fast path: uv is the dense pixel grid (u = p % W, v = p // W); synthesize it in-kernel
    # instead of streaming 8 B/px from HBM. Exact for pixel indices < 2**24 (f32 integers).
    base = pl.program_id(0) * 9
    r = pl.program_id(1)
    p0 = (r * (row_tile * LANE)).astype(jnp.float32)
    row_f = lax.broadcasted_iota(jnp.int32, (row_tile, LANE), 0).astype(jnp.float32)
    lane_f = lax.broadcasted_iota(jnp.int32, (row_tile, LANE), 1).astype(jnp.float32)
    p = p0 + row_f * float(LANE) + lane_f
    w = float(width)
    v = jnp.floor(p * (1.0 / w))
    u = p - v * w
    # one-step correction for f32 rounding at the column boundary (makes div/mod exact)
    v = jnp.where(u < 0.0, v - 1.0, v)
    u = jnp.where(u < 0.0, u + w, u)
    v = jnp.where(u >= w, v + 1.0, v)
    u = jnp.where(u >= w, u - w, u)
    _store_normalized_dirs(coef_ref, base, u, v, dir_ref)


def image_reader_forward(uv, intrinsics, extrinsics, size=None, *,
                         uv_is_grid=False, channels_last=True,
                         out_dtype=jnp.float32):
    """Pallas implementation of ImageReader.forward (eval / no_sampling path).

    uv:         (S, V, 2, N) float32 pixel coordinates (N = H*W)
    intrinsics: (S, 3, 3) or (S, V, 3, 3) float32
    extrinsics: (S, V, 4, 4) float32 affine cam->world matrices (bottom row [0,0,0,1])
    size:       optional (H, W) python ints; required when uv_is_grid=True
    uv_is_grid: uv is the dense row-major pixel grid -> synthesize it in-kernel (no uv read)
    channels_last: True -> ray_dir (S,V,N,3) (module contract, extra HBM transpose pass);
                   False -> planar (S,V,3,N) straight out of the kernel (fused-consumer layout)
    out_dtype:  ray_dir dtype (float32 default; bfloat16 halves output write traffic)

    Returns (ray_start (S,V,1,3), ray_dir, uv (S,V,2,N,1,1)).
    """
    S, V = uv.shape[:2]
    uv_flat = uv.reshape(S, V, 2, -1).astype(jnp.float32)
    N = uv_flat.shape[-1]
    SV = S * V

    if intrinsics.ndim == 3:
        ixt = jnp.broadcast_to(intrinsics[:, None], (S, V) + intrinsics.shape[1:])
    else:
        ixt = intrinsics
    ixt = ixt.astype(jnp.float32)
    ext = extrinsics.astype(jnp.float32)

    # Per-view coefficients (O(S*V) wrapper glue). With depth=1 / homogeneous w=1 and an
    # affine extrinsic (bottom row [0,0,0,1]) the translation cancels in (target - t):
    #   d_k = R[k,0]*(u-cx)/fx + R[k,1]*(v-cy)/fy + R[k,2] = A_k*u + B_k*v + C_k
    fx = ixt[..., 0, 0]
    fy = ixt[..., 1, 1]
    cx = ixt[..., 0, 2]
    cy = ixt[..., 1, 2]
    R = ext[..., :3, :3]                                  # (S, V, 3, 3)
    A = R[..., 0] / fx[..., None]                         # (S, V, 3)
    B = R[..., 1] / fy[..., None]
    C = R[..., 2] - A * cx[..., None] - B * cy[..., None]
    coef = jnp.stack([A, B, C], axis=-1).reshape(SV * 9).astype(jnp.float32)  # 1-D SMEM

    # Lane-dense layout: N -> (rows, 128) planes. No tile-multiple padding: ragged final
    # row chunks are handled by Pallas edge-block masking.
    rows = pl.cdiv(N, LANE)
    n_pix_pad = rows * LANE
    if rows > MAX_ROW_TILE:
        row_tile = MAX_ROW_TILE                            # multiple of 8; edge block masked
    elif SV == 1 and rows >= 16:
        row_tile = _round_up(pl.cdiv(rows, 2), 8)          # keep >=2 steps for v7x's 2 TCs
    else:
        row_tile = rows                                    # full-extent block (always legal)
    n_tiles = pl.cdiv(rows, row_tile)

    grid = (SV, n_tiles)
    out_shape = jax.ShapeDtypeStruct((SV, 3, rows, LANE), out_dtype)
    out_spec = pl.BlockSpec((pl.Squeezed(), 3, row_tile, LANE), lambda b, r: (b, 0, r, 0))
    coef_spec = pl.BlockSpec(memory_space=pltpu.MemorySpace.SMEM)
    cparams = pltpu.CompilerParams(
        dimension_semantics=("parallel", "parallel"),
        vmem_limit_bytes=32 * 1024 * 1024)

    use_grid_path = uv_is_grid and size is not None and N < (1 << 24)
    if use_grid_path:
        W = int(size[1])
        dir_planes = pl.pallas_call(
            functools.partial(_ray_dir_kernel_grid, width=W, row_tile=row_tile),
            out_shape=out_shape,
            grid=grid,
            in_specs=[coef_spec],
            out_specs=out_spec,
            compiler_params=cparams,
        )(coef)
    else:
        # Only pad when N is not already lane-aligned (and only up to rows*128).
        if n_pix_pad != N:
            uv_in = jnp.pad(uv_flat, ((0, 0), (0, 0), (0, 0), (0, n_pix_pad - N)))
        else:
            uv_in = uv_flat
        uv_b = uv_in.reshape(SV, 2, rows, LANE)
        dir_planes = pl.pallas_call(
            _ray_dir_kernel_uv,
            out_shape=out_shape,
            grid=grid,
            in_specs=[coef_spec,
                      pl.BlockSpec((pl.Squeezed(), 2, row_tile, LANE),
                                   lambda b, r: (b, 0, r, 0))],
            out_specs=out_spec,
            compiler_params=cparams,
        )(coef, uv_b)

    ray_dir = dir_planes.reshape(S, V, 3, n_pix_pad)
    if n_pix_pad != N:
        ray_dir = ray_dir[..., :N]
    if channels_last:
        ray_dir = jnp.swapaxes(ray_dir, 2, 3)              # module: .transpose(2,3) (extra pass)

    # ray_start == camera translation; pure slicing (glue, no compute)
    ray_start = ext[:, :, :3, 3][:, :, None, :]            # (S, V, 1, 3)
    uv_out = uv_flat.reshape(S, V, 2, N, 1, 1)             # no_sampling reshape

    # TODO(synk): training-mode sample_pixels (Gumbel top-k without replacement + boolean
    #             mask gather) and the trainable deltas/expos (depend on on-disk data index)
    #             are not translated; this covers the eval / no_sampling_at_reader path.
    return ray_start, ray_dir, uv_out


def _reference(uv, intrinsics, extrinsics):
    """Pure-JAX reference of the same math (for verification)."""
    S, V, _, N = uv.shape
    ixt = jnp.broadcast_to(intrinsics[:, None], (S, V, 3, 3)) if intrinsics.ndim == 3 else intrinsics
    fx = ixt[..., 0, 0][..., None]
    fy = ixt[..., 1, 1][..., None]
    cx = ixt[..., 0, 2][..., None]
    cy = ixt[..., 1, 2][..., None]
    x = (uv[:, :, 0, :] - cx) / fx
    y = (uv[:, :, 1, :] - cy) / fy
    ones = jnp.ones_like(x)
    cam = jnp.stack([x, y, ones, ones], axis=2)                        # (S, V, 4, N)
    tgt = jnp.einsum("svij,svjn->svin", extrinsics, cam)[:, :, :3]     # (S, V, 3, N)
    t = extrinsics[:, :, :3, 3][..., None]
    d = tgt - t
    d = d / (jnp.linalg.norm(d, axis=2, keepdims=True) + NORM_EPS)
    return t[..., 0][:, :, None, :], jnp.swapaxes(d, 2, 3)


if __name__ == "__main__":
    key = jax.random.PRNGKey(0)
    S, V, H, W = 2, 2, 16, 16
    N = H * W

    # pixel-grid uv: channel 0 = x coords, channel 1 = y coords (fairnr convention)
    ys, xs = jnp.meshgrid(jnp.arange(H, dtype=jnp.float32),
                          jnp.arange(W, dtype=jnp.float32), indexing="ij")
    uv = jnp.broadcast_to(jnp.stack([xs.reshape(-1), ys.reshape(-1)], 0), (S, V, 2, N))

    k1, k2, k3 = jax.random.split(key, 3)
    f = 20.0 + 2.0 * jax.random.uniform(k1, (S,), jnp.float32)
    base = jnp.array([[0.0, 0.0, W / 2.0], [0.0, 0.0, H / 2.0], [0.0, 0.0, 1.0]], jnp.float32)
    diag = jnp.array([[1.0, 0.0, 0.0], [0.0, 1.0, 0.0], [0.0, 0.0, 0.0]], jnp.float32)
    intrinsics = base[None] + f[:, None, None] * diag[None]            # (S, 3, 3)

    R = jax.random.normal(k2, (S, V, 3, 3), jnp.float32)
    t = jax.random.normal(k3, (S, V, 3), jnp.float32)
    top = jnp.concatenate([R, t[..., None]], axis=-1)
    bottom = jnp.broadcast_to(jnp.array([0.0, 0.0, 0.0, 1.0], jnp.float32), (S, V, 1, 4))
    extrinsics = jnp.concatenate([top, bottom], axis=-2)               # (S, V, 4, 4)

    ref_start, ref_dir = _reference(uv, intrinsics, extrinsics)

    # Path 1: module-exact contract (streams uv, channels-last ray_dir).
    ray_start, ray_dir, uv_out = image_reader_forward(uv, intrinsics, extrinsics)
    jax.block_until_ready(ray_dir)
    assert ray_start.shape == (S, V, 1, 3)
    assert ray_dir.shape == (S, V, N, 3)
    assert uv_out.shape == (S, V, 2, N, 1, 1)
    assert jnp.allclose(ray_start, ref_start, atol=1e-5, rtol=1e-5)
    assert jnp.allclose(ray_dir, ref_dir, atol=1e-5, rtol=1e-5)

    # Path 2: fast path — in-kernel pixel-grid synthesis, planar (fused-consumer) output.
    _, ray_dir_planar, _ = image_reader_forward(
        uv, intrinsics, extrinsics, size=(H, W),
        uv_is_grid=True, channels_last=False)
    jax.block_until_ready(ray_dir_planar)
    assert ray_dir_planar.shape == (S, V, 3, N)
    assert jnp.allclose(ray_dir_planar, jnp.swapaxes(ref_dir, 2, 3), atol=1e-5, rtol=1e-5)

    print("KERNEL_OK")
</pallas_src>

<mosaic_0001>
module attributes {stable_mosaic.version = 11 : i64} {
  func.func @_ray_dir_kernel_uv(%arg0: i32, %arg1: i32, %arg2: memref<36xf32, #tpu.memory_space<smem>>, %arg3: memref<1x2x2x128xf32, #tpu.memory_space<vmem>>, %arg4: memref<1x3x2x128xf32, #tpu.memory_space<vmem>>) attributes {dimension_semantics = [#tpu.dimension_semantics<parallel>, #tpu.dimension_semantics<parallel>], iteration_bounds = array<i64: 4, 1>, scalar_prefetch = 0 : i64, scratch_operands = 0 : i64, tpu.core_type = #tpu.core_type<tc>, window_params = [{transform_indices = @transform_0, window_bounds = array<i64: 36>}, {transform_indices = @transform_1, window_bounds = array<i64: 1, 2, 2, 128>}, {transform_indices = @transform_2, window_bounds = array<i64: 1, 3, 2, 128>}]} {
    %c9_i32 = arith.constant 9 : i32
    %0 = arith.muli %arg0, %c9_i32 : i32
    %c0 = arith.constant 0 : index
    %c0_0 = arith.constant 0 : index
    %c0_1 = arith.constant 0 : index
    %c0_2 = arith.constant 0 : index
    %1 = vector.load %arg3[%c0, %c0_0, %c0_1, %c0_2] : memref<1x2x2x128xf32, #tpu.memory_space<vmem>>, vector<1x1x2x128xf32>
    %2 = vector.shape_cast %1 : vector<1x1x2x128xf32> to vector<2x128xf32>
    %c0_3 = arith.constant 0 : index
    %c1 = arith.constant 1 : index
    %c0_4 = arith.constant 0 : index
    %c0_5 = arith.constant 0 : index
    %3 = vector.load %arg3[%c0_3, %c1, %c0_4, %c0_5] : memref<1x2x2x128xf32, #tpu.memory_space<vmem>>, vector<1x1x2x128xf32>
    %4 = vector.shape_cast %3 : vector<1x1x2x128xf32> to vector<2x128xf32>
    %c0_i32 = arith.constant 0 : i32
    %5 = arith.addi %0, %c0_i32 : i32
    %6 = arith.index_cast %5 : i32 to index
    %7 = memref.load %arg2[%6] : memref<36xf32, #tpu.memory_space<smem>>
    %8 = vector.broadcast %7 : f32 to vector<2x128xf32>
    %9 = arith.mulf %8, %2 : vector<2x128xf32>
    %c1_i32 = arith.constant 1 : i32
    %10 = arith.addi %0, %c1_i32 : i32
    %11 = arith.index_cast %10 : i32 to index
    %12 = memref.load %arg2[%11] : memref<36xf32, #tpu.memory_space<smem>>
    %13 = vector.broadcast %12 : f32 to vector<2x128xf32>
    %14 = arith.mulf %13, %4 : vector<2x128xf32>
    %15 = arith.addf %9, %14 : vector<2x128xf32>
    %c2_i32 = arith.constant 2 : i32
    %16 = arith.addi %0, %c2_i32 : i32
    %17 = arith.index_cast %16 : i32 to index
    %18 = memref.load %arg2[%17] : memref<36xf32, #tpu.memory_space<smem>>
    %19 = vector.broadcast %18 : f32 to vector<2x128xf32>
    %20 = arith.addf %15, %19 : vector<2x128xf32>
    %c3_i32 = arith.constant 3 : i32
    %21 = arith.addi %0, %c3_i32 : i32
    %22 = arith.index_cast %21 : i32 to index
    %23 = memref.load %arg2[%22] : memref<36xf32, #tpu.memory_space<smem>>
    %24 = vector.broadcast %23 : f32 to vector<2x128xf32>
    %25 = arith.mulf %24, %2 : vector<2x128xf32>
    %c4_i32 = arith.constant 4 : i32
    %26 = arith.addi %0, %c4_i32 : i32
    %27 = arith.index_cast %26 : i32 to index
    %28 = memref.load %arg2[%27] : memref<36xf32, #tpu.memory_space<smem>>
    %29 = vector.broadcast %28 : f32 to vector<2x128xf32>
    %30 = arith.mulf %29, %4 : vector<2x128xf32>
    %31 = arith.addf %25, %30 : vector<2x128xf32>
    %c5_i32 = arith.constant 5 : i32
    %32 = arith.addi %0, %c5_i32 : i32
    %33 = arith.index_cast %32 : i32 to index
    %34 = memref.load %arg2[%33] : memref<36xf32, #tpu.memory_space<smem>>
    %35 = vector.broadcast %34 : f32 to vector<2x128xf32>
    %36 = arith.addf %31, %35 : vector<2x128xf32>
    %c6_i32 = arith.constant 6 : i32
    %37 = arith.addi %0, %c6_i32 : i32
    %38 = arith.index_cast %37 : i32 to index
    %39 = memref.load %arg2[%38] : memref<36xf32, #tpu.memory_space<smem>>
    %40 = vector.broadcast %39 : f32 to vector<2x128xf32>
    %41 = arith.mulf %40, %2 : vector<2x128xf32>
    %c7_i32 = arith.constant 7 : i32
    %42 = arith.addi %0, %c7_i32 : i32
    %43 = arith.index_cast %42 : i32 to index
    %44 = memref.load %arg2[%43] : memref<36xf32, #tpu.memory_space<smem>>
    %45 = vector.broadcast %44 : f32 to vector<2x128xf32>
    %46 = arith.mulf %45, %4 : vector<2x128xf32>
    %47 = arith.addf %41, %46 : vector<2x128xf32>
    %c8_i32 = arith.constant 8 : i32
    %48 = arith.addi %0, %c8_i32 : i32
    %49 = arith.index_cast %48 : i32 to index
    %50 = memref.load %arg2[%49] : memref<36xf32, #tpu.memory_space<smem>>
    %51 = vector.broadcast %50 : f32 to vector<2x128xf32>
    %52 = arith.addf %47, %51 : vector<2x128xf32>
    %53 = arith.mulf %20, %20 : vector<2x128xf32>
    %54 = arith.mulf %36, %36 : vector<2x128xf32>
    %55 = arith.addf %53, %54 : vector<2x128xf32>
    %56 = arith.mulf %52, %52 : vector<2x128xf32>
    %57 = arith.addf %55, %56 : vector<2x128xf32>
    %58 = math.sqrt %57 : vector<2x128xf32>
    %cst = arith.constant 9.99999993E-9 : f32
    %59 = vector.broadcast %cst : f32 to vector<2x128xf32>
    %60 = arith.addf %58, %59 : vector<2x128xf32>
    %61 = tpu.reciprocal %60 : vector<2x128xf32> -> vector<2x128xf32>
    %62 = arith.mulf %20, %61 : vector<2x128xf32>
    %c0_6 = arith.constant 0 : index
    %c0_7 = arith.constant 0 : index
    %c0_8 = arith.constant 0 : index
    %c0_9 = arith.constant 0 : index
    %63 = vector.load %arg4[%c0_6, %c0_7, %c0_8, %c0_9] : memref<1x3x2x128xf32, #tpu.memory_space<vmem>>, vector<1x1x2x128xf32>
    %64 = vector.shape_cast %63 : vector<1x1x2x128xf32> to vector<2x128xf32>
    %65 = vector.shape_cast %62 : vector<2x128xf32> to vector<1x1x2x128xf32>
    tpu.vector_store %arg4[%c0_6, %c0_7, %c0_8, %c0_9], %65 {strides = array<i32>} : memref<1x3x2x128xf32, #tpu.memory_space<vmem>>, vector<1x1x2x128xf32>,
    %66 = arith.mulf %36, %61 : vector<2x128xf32>
    %c0_10 = arith.constant 0 : index
    %c1_11 = arith.constant 1 : index
    %c0_12 = arith.constant 0 : index
    %c0_13 = arith.constant 0 : index
    %67 = vector.load %arg4[%c0_10, %c1_11, %c0_12, %c0_13] : memref<1x3x2x128xf32, #tpu.memory_space<vmem>>, vector<1x1x2x128xf32>
    %68 = vector.shape_cast %67 : vector<1x1x2x128xf32> to vector<2x128xf32>
    %69 = vector.shape_cast %66 : vector<2x128xf32> to vector<1x1x2x128xf32>
    tpu.vector_store %arg4[%c0_10, %c1_11, %c0_12, %c0_13], %69 {strides = array<i32>} : memref<1x3x2x128xf32, #tpu.memory_space<vmem>>, vector<1x1x2x128xf32>,
    %70 = arith.mulf %52, %61 : vector<2x128xf32>
    %c0_14 = arith.constant 0 : index
    %c2 = arith.constant 2 : index
    %c0_15 = arith.constant 0 : index
    %c0_16 = arith.constant 0 : index
    %71 = vector.load %arg4[%c0_14, %c2, %c0_15, %c0_16] : memref<1x3x2x128xf32, #tpu.memory_space<vmem>>, vector<1x1x2x128xf32>
    %72 = vector.shape_cast %71 : vector<1x1x2x128xf32> to vector<2x128xf32>
    %73 = vector.shape_cast %70 : vector<2x128xf32> to vector<1x1x2x128xf32>
    tpu.vector_store %arg4[%c0_14, %c2, %c0_15, %c0_16], %73 {strides = array<i32>} : memref<1x3x2x128xf32, #tpu.memory_space<vmem>>, vector<1x1x2x128xf32>,
    return
  }
  func.func @transform_0(%arg0: i32, %arg1: i32) -> i32 {
    %c0_i32 = arith.constant 0 : i32
    %c0_i32_0 = arith.constant 0 : i32
    return %c0_i32 : i32
  }
  func.func @transform_1(%arg0: i32, %arg1: i32) -> (i32, i32, i32, i32) {
    %c0_i32 = arith.constant 0 : i32
    %c0_i32_0 = arith.constant 0 : i32
    %c0_i32_1 = arith.constant 0 : i32
    return %arg0, %c0_i32, %arg1, %c0_i32_0 : i32, i32, i32, i32
  }
  func.func @transform_2(%arg0: i32, %arg1: i32) -> (i32, i32, i32, i32) {
    %c0_i32 = arith.constant 0 : i32
    %c0_i32_0 = arith.constant 0 : i32
    %c0_i32_1 = arith.constant 0 : i32
    return %arg0, %c0_i32, %arg1, %c0_i32_0 : i32, i32, i32, i32
  }
}

</mosaic_0001>

<llo_original>
// kernel: tpu_custom_call.1
$region0: #{tpu_custom_call.1}
  #allocation0 [shape = 'u32[]', space=smem, size = 0x4, offset = 0x4, fixed_abs, tag = 'smem constant byte address 0x4 - core index']
  #allocation1 [shape = 'u32[72,128]{1,0:T(1,128)}', space=vmem, size = 0x9000, scoped, tag = 'internal scratch']
  %s0 = inlined_call_operand.hbm [shape: f32[36], index: 0, kind: input, shape index: {}]
  %s1 = inlined_call_operand.hbm [shape: f32[4,2,2,128], index: 1, kind: input, shape index: {}]
  %s2 = inlined_call_operand.hbm [shape: f32[4,3,2,128], index: 2, kind: output, shape index: {}]
  %s3 = sld [smem:[#allocation0]]
  $region49: #{tpu_custom_call.1} parent=0
    _
  %s5 = ssub.s32 1, %s3
  %s6 = scalar_select 0, %s5, %s3
  $region1: #{tpu_custom_call.1} parent=0
    #allocation2 [shape = 'u8[512]{0}', space=smem, size = 0x200, scoped, tag = 'input window, operand 0, single buffered']
    #allocation3 [shape = 's32[2]{0}', space=sflag, size = 0x8, scoped, tag = 'scoped memory for tpu_custom_call.1']
    #allocation4 [shape = 's32[2]{0}', space=sflag, size = 0x8, scoped, tag = 'scoped memory for tpu_custom_call.1']
    #allocation5 [shape = 's32[2]{0}', space=sflag, size = 0x8, scoped, tag = 'scoped memory for tpu_custom_call.1']
    #allocation6 [shape = 'u8[4096]{0}', space=vmem, size = 0x1000, scoped, tag = 'input window, operand 1']
    #allocation7 [shape = 'u8[6144]{0}', space=vmem, size = 0x1800, scoped, tag = 'output window, operand 0']
    %7 = vsyncpa [#allocation5], 0
    %8 = vsyncpa [#allocation3], 0
    %s9 = scalar_lea.sflag [#allocation3], 1
    %10 = vsyncpa %s9, 0
    %11 = vsyncpa [#allocation4], 0
    %s12 = scalar_lea.sflag [#allocation4], 1
    %13 = vsyncpa %s12, 0
    loop: start=0, step=1, limit=6
    $region2: #{tpu_custom_call.1} parent=1 // loop_pre_header
      _
    $region3: #{tpu_custom_call.1} parent=1 // loop_header
      %s15 = sphi 0, %s19
      %p16 = scmp.ge.s32.totalorder %s15, 6
      %s22 = sphi 0, %s34
      %s23 = sphi 0, %s30
      %s24 = sphi 0, %s22
      %s25 = sphi 0, %s23
      %s26 = sphi 0, %s24
      %s27 = sphi 0, %s25
      %s35 = sphi 0, %s35
      %s37 = sphi 0, %s35
      %s38 = sphi 0, %s37
      %s52 = sphi 0, %s38
      %s60 = sphi 0, %s62
      %s63 = sphi 0, %s60
      %s64 = sphi 0, %s63
      %s80 = sphi 0, %s64
      %s88 = sphi 0, %s90
      %s91 = sphi 0, %s88
      %s92 = sphi 0, %s91
      %s108 = sphi 0, %s92
    $region4: #{tpu_custom_call.1} parent=1 // loop_header_branch
      %18 = sbr.rel (%p16) target = $region8
    $region5: #{tpu_custom_call.1} parent=1 // loop_body
      %s20 = ssub.s32 %s15, 1
      %s21 = ssub.s32 %s15, 2
      %s28 = sadd.s32 1, %s23
      %p29 = scmp.ge.s32.totalorder %s28, 1
      %s30 = scalar_select %p29, 0, %s28
      %s31 = sadd.s32 1, %s22
      %s32 = scalar_select %p29, %s31, %s22
      %p33 = scmp.ge.s32.totalorder %s32, 4
      %s34 = scalar_select %p33, 0, %s32
      %s36 = sadd.s32 %s35, 1
      %p39 = scmp.eq.s32.totalorder %s15, 3
      %p40 = scmp.ne.s32.totalorder %s35, %s37
      %p41 = scmp.eq.s32.totalorder %s15, 0
      %p42 = por %p40, %p41
      %p43 = scmp.ne.s32.totalorder %s35, %s37
      %p44 = scmp.eq.s32.totalorder %s20, 3
      %p45 = por %p43, %p44
      %p46 = scmp.ne.s32.totalorder %s37, %s38
      %p47 = scmp.eq.s32.totalorder %s20, 0
      %p48 = por %p46, %p47
      %p49 = scmp.ne.s32.totalorder %s37, %s38
      %p50 = scmp.eq.s32.totalorder %s21, 3
      %p51 = por %p49, %p50
      %p53 = scmp.ne.s32.totalorder %s38, %s52
      %p54 = scmp.eq.s32.totalorder %s21, 0
      %p55 = por %p53, %p54
      %s56 = ssub.s32 %s22, %s34
      %s57 = ssub.s32 %s23, %s30
      %s58 = sor.u32 %s56, %s57
      %p59 = scmp.eq.s32.totalorder %s58, 0
      %s61 = sadd.s32 %s60, 1
      %s62 = scalar_select %p59, %s60, %s61
      %p65 = pneg %p59
      %p66 = scmp.eq.s32.totalorder %s15, 3
      %p67 = por %p65, %p66
      %p68 = scmp.ne.s32.totalorder %s60, %s63
      %p69 = scmp.eq.s32.totalorder %s15, 0
      %p70 = por %p68, %p69
      %p71 = scmp.ne.s32.totalorder %s60, %s63
      %p72 = scmp.eq.s32.totalorder %s20, 3
      %p73 = por %p71, %p72
      %p74 = scmp.ne.s32.totalorder %s63, %s64
      %p75 = scmp.eq.s32.totalorder %s20, 0
      %p76 = por %p74, %p75
      %p77 = scmp.ne.s32.totalorder %s63, %s64
      %p78 = scmp.eq.s32.totalorder %s21, 3
      %p79 = por %p77, %p78
      %p81 = scmp.ne.s32.totalorder %s64, %s80
      %p82 = scmp.eq.s32.totalorder %s21, 0
      %p83 = por %p81, %p82
      %s84 = ssub.s32 %s22, %s34
      %s85 = ssub.s32 %s23, %s30
      %s86 = sor.u32 %s84, %s85
      %p87 = scmp.eq.s32.totalorder %s86, 0
      %s89 = sadd.s32 %s88, 1
      %s90 = scalar_select %p87, %s88, %s89
      %p93 = pneg %p87
      %p94 = scmp.eq.s32.totalorder %s15, 3
      %p95 = por %p93, %p94
      %p96 = scmp.ne.s32.totalorder %s88, %s91
      %p97 = scmp.eq.s32.totalorder %s15, 0
      %p98 = por %p96, %p97
      %p99 = scmp.ne.s32.totalorder %s88, %s91
      %p100 = scmp.eq.s32.totalorder %s20, 3
      %p101 = por %p99, %p100
      %p102 = scmp.ne.s32.totalorder %s91, %s92
      %p103 = scmp.eq.s32.totalorder %s20, 0
      %p104 = por %p102, %p103
      %p105 = scmp.ne.s32.totalorder %s91, %s92
      %p106 = scmp.eq.s32.totalorder %s21, 3
      %p107 = por %p105, %p106
      %p109 = scmp.ne.s32.totalorder %s92, %s108
      %p110 = scmp.eq.s32.totalorder %s21, 0
      %p111 = por %p109, %p110
      %p112 = scmp.le.s32.totalorder 1, %s15
      %p113 = scmp.lt.s32.totalorder %s15, 5
      %p114 = pnand %p112, %p113
      %p115 = pneg %p114
      // Predicated region
      $region9: #{tpu_custom_call.1} parent=5 // pred_check
        _
      $region10: #{tpu_custom_call.1} parent=5 // pred_check_branch
        %117 = sbr.rel (%p114) target = $region12
      $region11: #{tpu_custom_call.1} parent=5 // pred_region
        %s118 = ssub.s32 %s15, 1
        // Predicated region
        $region13: #{tpu_custom_call.1} parent=11 // pred_check
          %p119 = pneg %p48
        $region14: #{tpu_custom_call.1} parent=11 // pred_check_branch
          %121 = sbr.rel (%p119) target = $region16
        $region15: #{tpu_custom_call.1} parent=11 // pred_region
          %123 = vsyncadd [#allocation5], 0
          %s125 = sshll.u32 %s0, 4
          %s126 = int_to_ptr.hbm [resolvable:$true] %s125
          %128 = dma.hbm_to_smem %s126, 16, [#allocation2], [#allocation5]
        $region16: #{tpu_custom_call.1} parent=11 // pred_fallthru
          _
      $region12: #{tpu_custom_call.1} parent=5 // pred_fallthru
        _
      %p129 = scmp.lt.s32.totalorder %s15, 4
      // Predicated region
      $region17: #{tpu_custom_call.1} parent=5 // pred_check
        %p130 = pneg %p129
      $region18: #{tpu_custom_call.1} parent=5 // pred_check_branch
        %132 = sbr.rel (%p130) target = $region20
      $region19: #{tpu_custom_call.1} parent=5 // pred_region
        // Predicated region
        $region21: #{tpu_custom_call.1} parent=19 // pred_check
          %p133 = pneg %p70
        $region22: #{tpu_custom_call.1} parent=19 // pred_check_branch
          %135 = sbr.rel (%p133) target = $region24
        $region23: #{tpu_custom_call.1} parent=19 // pred_region
          %s136 = sand.u32 %s60, 1
          %s137 = scalar_lea.sflag [#allocation3], %s136
          %s138 = sand.u32 %s60, 1
          %s139 = smul.addr %s138, 4
          %s140 = scalar_lea.vmem [#allocation6], %s139
          %142 = vsyncadd %s137, 0
          %s143 = smul.addr %s22, 2
          %s144 = sadd.s32 %s23, %s143
          %s145 = smul.addr %s144, 2
          %s146 = scalar_lea.hbm %s1, %s145
          %s147 = sshll.u32 %s146, 4
          %s148 = int_to_ptr.hbm [resolvable:$true] %s147
          %s149 = sshll.u32 %s140, 4
          %s150 = int_to_ptr.vmem [resolvable:$true] %s149
          %155 = dma.hbm_to_vmem [thread:$0]  %s148, 64, %s150, %s137, 32, 32, 2
        $region24: #{tpu_custom_call.1} parent=19 // pred_fallthru
          _
      $region20: #{tpu_custom_call.1} parent=5 // pred_fallthru
        _
      %p156 = scmp.le.s32.totalorder 1, %s15
      %p157 = scmp.lt.s32.totalorder %s15, 5
      %p158 = pnand %p156, %p157
      %p159 = pneg %p158
      // Predicated region
      $region25: #{tpu_custom_call.1} parent=5 // pred_check
        _
      $region26: #{tpu_custom_call.1} parent=5 // pred_check_branch
        %161 = sbr.rel (%p158) target = $region28
      $region27: #{tpu_custom_call.1} parent=5 // pred_region
        %s162 = ssub.s32 %s15, 1
        // Predicated region
        $region29: #{tpu_custom_call.1} parent=27 // pred_check
          %p163 = pneg %p48
        $region30: #{tpu_custom_call.1} parent=27 // pred_check_branch
          %165 = sbr.rel (%p163) target = $region32
        $region31: #{tpu_custom_call.1} parent=27 // pred_region
          %167 = dma.done [#allocation5], 16
        $region32: #{tpu_custom_call.1} parent=27 // pred_fallthru
          _
        %s168 = sand.u32 %s63, 1
        %s169 = scalar_lea.sflag [#allocation3], %s168
        %s170 = sand.u32 %s63, 1
        %s171 = smul.addr %s170, 4
        %s172 = scalar_lea.vmem [#allocation6], %s171
        // Predicated region
        $region33: #{tpu_custom_call.1} parent=27 // pred_check
          %p173 = pneg %p76
        $region34: #{tpu_custom_call.1} parent=27 // pred_check_branch
          %175 = sbr.rel (%p173) target = $region36
        $region35: #{tpu_custom_call.1} parent=27 // pred_region
          %177 = dma.done %s169, 64
        $region36: #{tpu_custom_call.1} parent=27 // pred_fallthru
          _
        %178 = sfence
        %p179 = pneg %p48
        %p180 = pneg %p45
        %s181 = sand.u32 %s63, 1
        %s182 = scalar_lea.sflag [#allocation3], %s181
        %s183 = sand.u32 %s63, 1
        %s184 = smul.addr %s183, 4
        %s185 = scalar_lea.vmem [#allocation6], %s184
        %p186 = pneg %p76
        %p187 = pneg %p73
        %p188 = pneg %p104
        %p189 = pneg %p101
        %s190 = sand.u32 %s91, 1
        %s191 = scalar_lea.sflag [#allocation4], %s190
        %s192 = sand.u32 %s91, 1
        %s193 = smul.addr %s192, 6
        %s194 = scalar_lea.vmem [#allocation7], %s193
        %s195 = smul.u32 %s24, 9
        %v196 = vld [vmem:[%s172] sm:$0x3]
        %s197 = scalar_lea.vmem %s172, 2 [#allocation6]
        %v198 = vld [vmem:[%s197] sm:$0x3]
        %s199 = sld [smem:[#allocation2 + %s195]]
        %v200 = vstv %s199
        %v201 = vmul.f32 %v200, %v196
        %s202 = sadd.s32 %s195, 1
        %s203 = sld [smem:[#allocation2 + %s202]]
        %v204 = vstv %s203
        %v205 = vmul.f32 %v204, %v198
        %v206 = vadd.f32 %v201, %v205
        %s207 = sadd.s32 %s195, 2
        %s208 = sld [smem:[#allocation2 + %s207]]
        %v209 = vstv %s208
        %v210 = vadd.f32 %v206, %v209
        %s211 = sadd.s32 %s195, 3
        %s212 = sld [smem:[#allocation2 + %s211]]
        %v213 = vstv %s212
        %v214 = vmul.f32 %v213, %v196
        %s215 = sadd.s32 %s195, 4
        %s216 = sld [smem:[#allocation2 + %s215]]
        %v217 = vstv %s216
        %v218 = vmul.f32 %v217, %v198
        %v219 = vadd.f32 %v214, %v218
        %s220 = sadd.s32 %s195, 5
        %s221 = sld [smem:[#allocation2 + %s220]]
        %v222 = vstv %s221
        %v223 = vadd.f32 %v219, %v222
        %s224 = sadd.s32 %s195, 6
        %s225 = sld [smem:[#allocation2 + %s224]]
        %v226 = vstv %s225
        %v227 = vmul.f32 %v226, %v196
        %s228 = sadd.s32 %s195, 7
        %s229 = sld [smem:[#allocation2 + %s228]]
        %v230 = vstv %s229
        %v231 = vmul.f32 %v230, %v198
        %v232 = vadd.f32 %v227, %v231
        %s233 = sadd.s32 %s195, 8
        %s234 = sld [smem:[#allocation2 + %s233]]
        %v235 = vstv %s234
        %v236 = vadd.f32 %v232, %v235
        %v237 = vmul.f32 %v210, %v210
        %v238 = vmul.f32 %v223, %v223
        %v239 = vadd.f32 %v237, %v238
        %v240 = vmul.f32 %v236, %v236
        %v241 = vadd.f32 %v239, %v240
        %v242 = vrsqrt.pop %v241
        %v243 = vmul.f32 %v242, %v241
        %v244 = vmul.f32 %v243, %v242
        %v245 = vmul.f32 0.5, %v244
        %v246 = vsub.f32 1.5, %v245
        %v247 = vmul.f32 %v242, %v246
        %v248 = vmul.f32 %v241, %v247
        %vm249 = vcmp.eq.f32.partialorder %v241, inf
        %v250 = vsel %vm249, %v241, %v248
        %vm251 = vcmp.eq.f32.partialorder %v241, 0.0
        %v252 = vand.u32 %v241, 2147483648
        %v253 = vsel %vm251, %v252, %v250
        %v254 = vadd.f32 %v253, 1e-08
        %v255 = vrcp.pop %v254
        %v256 = vmul.f32 %v254, %v255
        %v257 = vsub.f32 1.0, %v256
        %v258 = vmul.f32 %v255, %v257
        %v259 = vadd.f32 %v255, %v258
        %vm260 = vweird.f32 %v254
        %vm261 = vweird.f32 %v255
        %vm262 = vmor %vm260, %vm261
        %v263 = vsel %vm262, %v255, %v259
        %v264 = vand.u32 2147483647, %v254
        %vm265 = vcmp.eq.f32.partialorder %v264, 8.507059e+37
        %v266 = vand.u32 %v254, 2147483648
        %v267 = vor.u32 1.1754944e-38, %v266
        %v268 = vsel %vm265, %v267, %v263
        %v269 = vmul.f32 %v210, %v268
        %270 = vst [vmem:[%s194] sm:$0x3] %v269
        %v271 = vmul.f32 %v223, %v268
        %s272 = scalar_lea.vmem %s194, 2 [#allocation7]
        %273 = vst [vmem:[%s272] sm:$0x3] %v271
        %v274 = vmul.f32 %v236, %v268
        %s275 = scalar_lea.vmem %s194, 4 [#allocation7]
        %276 = vst [vmem:[%s275] sm:$0x3] %v274
        %s277 = sand.u32 %s91, 1
        %s278 = scalar_lea.sflag [#allocation4], %s277
        %s279 = sand.u32 %s91, 1
        %s280 = smul.addr %s279, 6
        %s281 = scalar_lea.vmem [#allocation7], %s280
        // Predicated region
        $region37: #{tpu_custom_call.1} parent=27 // pred_check
          %p282 = pneg %p101
        $region38: #{tpu_custom_call.1} parent=27 // pred_check_branch
          %284 = sbr.rel (%p282) target = $region40
        $region39: #{tpu_custom_call.1} parent=27 // pred_region
          %286 = vsyncadd %s278, 0
          %s287 = smul.addr %s24, 3
          %s288 = sadd.s32 %s25, %s287
          %s289 = smul.addr %s288, 2
          %s290 = scalar_lea.hbm %s2, %s289
          %s291 = sshll.u32 %s281, 4
          %s292 = int_to_ptr.vmem [resolvable:$true] %s291
          %s293 = sshll.u32 %s290, 4
          %s294 = int_to_ptr.hbm [resolvable:$true] %s293
          %299 = dma.vmem_to_hbm [thread:$0]  %s292, 96, %s294, %s278, 32, 32, 2
        $region40: #{tpu_custom_call.1} parent=27 // pred_fallthru
          _
      $region28: #{tpu_custom_call.1} parent=5 // pred_fallthru
        _
      %p300 = scmp.le.s32.totalorder 2, %s15
      // Predicated region
      $region41: #{tpu_custom_call.1} parent=5 // pred_check
        %p301 = pneg %p300
      $region42: #{tpu_custom_call.1} parent=5 // pred_check_branch
        %303 = sbr.rel (%p301) target = $region44
      $region43: #{tpu_custom_call.1} parent=5 // pred_region
        %s304 = ssub.s32 %s15, 2
        // Predicated region
        $region45: #{tpu_custom_call.1} parent=43 // pred_check
          %p305 = pneg %p107
        $region46: #{tpu_custom_call.1} parent=43 // pred_check_branch
          %307 = sbr.rel (%p305) target = $region48
        $region47: #{tpu_custom_call.1} parent=43 // pred_region
          %s308 = sand.u32 %s92, 1
          %s309 = scalar_lea.sflag [#allocation4], %s308
          %s310 = sand.u32 %s92, 1
          %s311 = smul.addr %s310, 6
          %s312 = scalar_lea.vmem [#allocation7], %s311
          %314 = dma.done %s309, 96
        $region48: #{tpu_custom_call.1} parent=43 // pred_fallthru
          _
      $region44: #{tpu_custom_call.1} parent=5 // pred_fallthru
        _
    $region6: #{tpu_custom_call.1} parent=1 // loop_footer
      %s19 = sadd.s32 1, %s15
    $region7: #{tpu_custom_call.1} parent=1 // loop_footer_branch
      %14 = sbr.rel target = $region3
    $region8: #{tpu_custom_call.1} parent=1 // loop_exit
      _
    %315 = vsyncpa [#allocation3], 1
    %s316 = scalar_lea.sflag [#allocation3], 1
    %317 = vsyncpa %s316, 1
    %318 = vsyncpa [#allocation4], 1
    %s319 = scalar_lea.sflag [#allocation4], 1
    %320 = vsyncpa %s319, 1
    %321 = vsyncpa [#allocation5], 1
    %s322 = scalar_lea.sflag [#allocation5], 1
    %323 = vsyncpa %s322, 1

</llo_original>
